<compile_context>
chip_gen: v6e
topology: v6e:2x2x1
jax: 0.10.0
libtpu: 0.0.40
codegen_flags: <defaults>
</compile_context>

<pallas_src>
import functools

import jax
import jax.numpy as jnp
from jax import lax
from jax.experimental import pallas as pl
from jax.experimental.pallas import tpu as pltpu

LANE = 128
SUBLANE = 8
MAX_TILE_BYTES = 4 * 1024 * 1024      # ~4 MiB per input tile; 2x double-buffered = 8 MiB
VMEM_LIMIT_BYTES = 32 * 1024 * 1024   # safe on v5e/v6e (128 MiB phys) and v7x (64 MiB phys)


def _make_kernel(tm, sps, num_blocks, rows_valid, needs_mask, cast_to_f32):
    """Observer min/max kernel for a fixed tiling.

    Grid = (nsplit, sps): axis 0 ("parallel") splits row-blocks across TensorCores
    (v7x megacore); axis 1 ("arbitrary") walks the row-blocks of one split. Outputs are
    per-split (8,128) partial min/max accumulators whose block index depends only on
    axis 0, so each stays resident in VMEM across the whole reduction axis.
    """

    def accumulate(min_ref, max_ref, t_min, t_max):
        if tm % SUBLANE == 0:
            # Pure-VPU fold of the (tm,128) tile into one vreg-shaped (8,128) partial:
            # reshape keeps (8,128) tile boundaries, reduce over the major axis is an
            # elementwise combine of vregs (no XLU in the hot loop).
            g = tm // SUBLANE
            p_min = jnp.min(t_min.reshape(g, SUBLANE, LANE), axis=0)
            p_max = jnp.max(t_max.reshape(g, SUBLANE, LANE), axis=0)
        else:
            # Tiny single-block inputs (tm == rows < 8): a (1,128) partial that
            # intentionally broadcasts against the (8,128) accumulator below.
            p_min = jnp.min(t_min, axis=0, keepdims=True)
            p_max = jnp.max(t_max, axis=0, keepdims=True)
        min_ref[...] = jnp.minimum(min_ref[...], p_min.astype(jnp.float32))
        max_ref[...] = jnp.maximum(max_ref[...], p_max.astype(jnp.float32))

    def kernel(x_ref, min_out_ref, max_out_ref):
        j = pl.program_id(1)

        @pl.when(j == 0)
        def _init():
            min_out_ref[...] = jnp.full_like(min_out_ref, jnp.inf)
            max_out_ref[...] = jnp.full_like(max_out_ref, -jnp.inf)

        tile = x_ref[...]
        if cast_to_f32:
            tile = tile.astype(jnp.float32)   # upcast AFTER the DMA (HBM stays native)

        if needs_mask:
            # Mask only the single row-block that overhangs the real row count; every
            # other step stays at 2 VPU ops/vreg.  blk is clamped exactly like the
            # input index_map, so clamped (re-read) steps also take the masked path.
            blk = jnp.minimum(pl.program_id(0) * sps + j, num_blocks - 1)
            is_last = blk == num_blocks - 1

            @pl.when(is_last)
            def _masked():
                row = (num_blocks - 1) * tm + lax.broadcasted_iota(
                    jnp.int32, (tm, LANE), 0)
                valid = row < rows_valid
                pos = jnp.array(jnp.inf, tile.dtype)
                neg = jnp.array(-jnp.inf, tile.dtype)
                accumulate(min_out_ref, max_out_ref,
                           jnp.where(valid, tile, pos),
                           jnp.where(valid, tile, neg))

            @pl.when(jnp.logical_not(is_last))
            def _plain():
                accumulate(min_out_ref, max_out_ref, tile, tile)
        else:
            accumulate(min_out_ref, max_out_ref, tile, tile)

    return kernel


def _kernel_minmax(x2, max_tile_rows=None):
    """(rows,128) array -> ((nsplit*8,128) partial mins, (nsplit*8,128) partial maxes)."""
    rows = x2.shape[0]
    itemsize = jnp.dtype(x2.dtype).itemsize
    # Row-tile granularity keeping blocks aligned to the native vreg tiling.
    if itemsize >= 4:
        round_rows = SUBLANE
    elif itemsize == 2:
        round_rows = 2 * SUBLANE
    else:
        round_rows = 4 * SUBLANE

    if max_tile_rows is None:
        max_tile_rows = max(
            round_rows,
            (MAX_TILE_BYTES // (LANE * itemsize)) // round_rows * round_rows)

    if rows < round_rows:
        tm = rows                              # single full-extent block (tiny input)
    else:
        tm = min(max_tile_rows, (rows // round_rows) * round_rows)
    num_blocks = pl.cdiv(rows, tm)
    needs_mask = (rows % tm) != 0

    # Split the row-blocks across two TensorCores (v7x megacore) whenever there is more
    # than one block.  Odd block counts: the short split's extra step re-reads the last
    # block via the index clamp below -- harmless (min/max is idempotent) and the
    # repeated block index elides the redundant DMA.  No cost on single-core v5e/v6e.
    nsplit = 2 if num_blocks >= 2 else 1
    sps = pl.cdiv(num_blocks, nsplit)

    # Fold in the native dtype for f32/bf16/f16 (min/max is exact; halves VPU work and
    # VMEM traffic per element for 16-bit inputs); otherwise upcast to f32 in-kernel.
    cast_to_f32 = not (jnp.issubdtype(x2.dtype, jnp.floating) and itemsize >= 2)

    kernel = _make_kernel(tm, sps, num_blocks, rows, needs_mask, cast_to_f32)

    return pl.pallas_call(
        kernel,
        out_shape=(jax.ShapeDtypeStruct((nsplit * SUBLANE, LANE), jnp.float32),
                   jax.ShapeDtypeStruct((nsplit * SUBLANE, LANE), jnp.float32)),
        grid_spec=pltpu.PrefetchScalarGridSpec(
            num_scalar_prefetch=0,
            grid=(nsplit, sps),
            in_specs=[pl.BlockSpec(
                (tm, LANE),
                lambda i, j: (jnp.minimum(i * sps + j, num_blocks - 1), 0))],
            out_specs=[pl.BlockSpec((SUBLANE, LANE), lambda i, j: (i, 0)),
                       pl.BlockSpec((SUBLANE, LANE), lambda i, j: (i, 0))],
        ),
        compiler_params=pltpu.CompilerParams(
            dimension_semantics=("parallel", "arbitrary"),
            vmem_limit_bytes=VMEM_LIMIT_BYTES),
    )(x2)


@functools.partial(jax.jit, static_argnames=("averaging_constant",))
def _run_observer(x, min_state, max_state, averaging_constant):
    xf = x.reshape(-1)                 # bitcast-free for a contiguous array, native dtype
    n = xf.shape[0]
    body_rows = n // LANE
    tail_n = n - body_rows * LANE

    cur_min = None
    cur_max = None

    if body_rows > 0:
        if tail_n == 0:
            x2 = xf.reshape(body_rows, LANE)          # copy-free fast path (numel%128==0)
        else:
            # TODO(synk): this prefix slice still materializes one copy of the body (XLA
            # slice feeding a custom call); a fully copy-free ragged path would need a
            # manual-DMA 1-D kernel.  The <=127-element tail is reduced in the wrapper
            # below instead of pad-copying the whole tensor.
            x2 = xf[: body_rows * LANE].reshape(body_rows, LANE)
        part_min, part_max = _kernel_minmax(x2)
        cur_min = jnp.min(part_min)
        cur_max = jnp.max(part_max)

    if tail_n > 0:
        tail = xf[body_rows * LANE:].astype(jnp.float32)
        t_min = jnp.min(tail)
        t_max = jnp.max(tail)
        cur_min = t_min if cur_min is None else jnp.minimum(cur_min, t_min)
        cur_max = t_max if cur_max is None else jnp.maximum(cur_max, t_max)

    # Scalar moving-average state update (a handful of flops; torch does this on scalars).
    # NOTE: NaN propagation follows jnp.min/minimum semantics, matching torch.aminmax.
    c = jnp.float32(averaging_constant)
    min_state = min_state.astype(jnp.float32)
    max_state = max_state.astype(jnp.float32)
    first = jnp.logical_and(min_state == jnp.inf, max_state == -jnp.inf)
    new_min = jnp.where(first, cur_min, min_state + c * (cur_min - min_state))
    new_max = jnp.where(first, cur_max, max_state + c * (cur_max - max_state))
    return new_min, new_max


class MovingAverageMinMaxObserver:
    """JAX/Pallas port of torch.ao.quantization.observer.MovingAverageMinMaxObserver.

    Only the forward-pass statistics update is implemented (the hot path: global
    aminmax reduction + moving-average state update).
    """

    def __init__(self, averaging_constant=0.01):
        self.averaging_constant = float(averaging_constant)
        # Buffers registered in __init__: scalar running min/max, initialized to +/-inf.
        self.min_val = jnp.array(jnp.inf, dtype=jnp.float32)
        self.max_val = jnp.array(-jnp.inf, dtype=jnp.float32)

    def forward(self, x_orig):
        if x_orig.size == 0:
            return x_orig
        new_min, new_max = _run_observer(
            x_orig, self.min_val, self.max_val, self.averaging_constant)
        self.min_val = new_min
        self.max_val = new_max
        return x_orig

    __call__ = forward

    # TODO(synk): calculate_qparams (scale/zero_point math) is host-side scalar glue in
    # PyTorch and is not part of forward; not ported to a Pallas kernel.


if __name__ == "__main__":
    key = jax.random.PRNGKey(0)
    k1, k2, k3, k4 = jax.random.split(key, 4)

    # NCHW input, small shapes (numel % 128 == 0 -> copy-free fast path, single block).
    x1 = jax.random.normal(k1, (2, 4, 16, 16), dtype=jnp.float32)
    x2 = 2.5 * jax.random.normal(k2, (2, 4, 16, 16), dtype=jnp.float32) + 0.3

    obs = MovingAverageMinMaxObserver(averaging_constant=0.01)

    # First call: state uninitialized -> state = aminmax(x1)
    out1 = obs(x1)
    jax.block_until_ready((out1, obs.min_val, obs.max_val))
    ref_min = jnp.min(x1)
    ref_max = jnp.max(x1)
    assert jnp.allclose(obs.min_val, ref_min, rtol=1e-6, atol=1e-6)
    assert jnp.allclose(obs.max_val, ref_max, rtol=1e-6, atol=1e-6)
    assert out1.shape == x1.shape and out1.dtype == x1.dtype
    assert jnp.array_equal(out1, x1)

    # Second call: moving-average update
    out2 = obs(x2)
    jax.block_until_ready((out2, obs.min_val, obs.max_val))
    c = 0.01
    ref_min2 = ref_min + c * (jnp.min(x2) - ref_min)
    ref_max2 = ref_max + c * (jnp.max(x2) - ref_max)
    assert jnp.allclose(obs.min_val, ref_min2, rtol=1e-6, atol=1e-6)
    assert jnp.allclose(obs.max_val, ref_max2, rtol=1e-6, atol=1e-6)

    # Ragged numel (% 128 != 0): exercises the tail-in-wrapper path and the in-kernel
    # masked-last-block path.
    x3 = jax.random.normal(k3, (3, 5, 7, 16), dtype=jnp.float32) * 1.7 - 0.2
    obs2 = MovingAverageMinMaxObserver(averaging_constant=0.01)
    out3 = obs2(x3)
    jax.block_until_ready((out3, obs2.min_val, obs2.max_val))
    assert jnp.allclose(obs2.min_val, jnp.min(x3), rtol=1e-6, atol=1e-6)
    assert jnp.allclose(obs2.max_val, jnp.max(x3), rtol=1e-6, atol=1e-6)
    assert jnp.array_equal(out3, x3)

    # Direct kernel check of the multi-block / megacore-split / clamped-index /
    # masked-last-block path, using a small row-tile cap so the test input stays small.
    x4 = jax.random.normal(k4, (260, LANE), dtype=jnp.float32) * 3.0 + 1.0
    pmin, pmax = _kernel_minmax(x4, max_tile_rows=64)
    jax.block_until_ready((pmin, pmax))
    assert jnp.allclose(jnp.min(pmin), jnp.min(x4), rtol=1e-6, atol=1e-6)
    assert jnp.allclose(jnp.max(pmax), jnp.max(x4), rtol=1e-6, atol=1e-6)

    print("KERNEL_OK")
</pallas_src>

<mosaic_0001>
module attributes {stable_mosaic.version = 11 : i64} {
  func.func @kernel(%arg0: i32, %arg1: i32, %arg2: memref<16x128xf32, #tpu.memory_space<vmem>>, %arg3: memref<8x128xf32, #tpu.memory_space<vmem>>, %arg4: memref<8x128xf32, #tpu.memory_space<vmem>>) attributes {dimension_semantics = [#tpu.dimension_semantics<parallel>, #tpu.dimension_semantics<arbitrary>], iteration_bounds = array<i64: 1, 1>, scalar_prefetch = 0 : i64, scratch_operands = 0 : i64, tpu.core_type = #tpu.core_type<tc>, window_params = [{transform_indices = @transform_0, window_bounds = array<i64: 16, 128>}, {transform_indices = @transform_1, window_bounds = array<i64: 8, 128>}, {transform_indices = @transform_2, window_bounds = array<i64: 8, 128>}]} {
    %c0_i32 = arith.constant 0 : i32
    %0 = arith.cmpi eq, %arg1, %c0_i32 : i32
    %1 = arith.extui %0 : i1 to i32
    %c0_i32_0 = arith.constant 0 : i32
    %2 = arith.cmpi ne, %1, %c0_i32_0 : i32
    scf.if %2 {
      %cst_11 = arith.constant 0x7F800000 : f32
      %14 = vector.broadcast %cst_11 : f32 to vector<8x128xf32>
      %c0_12 = arith.constant 0 : index
      %c0_13 = arith.constant 0 : index
      %15 = vector.load %arg3[%c0_12, %c0_13] : memref<8x128xf32, #tpu.memory_space<vmem>>, vector<8x128xf32>
      tpu.vector_store %arg3[%c0_12, %c0_13], %14 {strides = array<i32>} : memref<8x128xf32, #tpu.memory_space<vmem>>, vector<8x128xf32>,
      %cst_14 = arith.constant 0xFF800000 : f32
      %16 = vector.broadcast %cst_14 : f32 to vector<8x128xf32>
      %c0_15 = arith.constant 0 : index
      %c0_16 = arith.constant 0 : index
      %17 = vector.load %arg4[%c0_15, %c0_16] : memref<8x128xf32, #tpu.memory_space<vmem>>, vector<8x128xf32>
      tpu.vector_store %arg4[%c0_15, %c0_16], %16 {strides = array<i32>} : memref<8x128xf32, #tpu.memory_space<vmem>>, vector<8x128xf32>,
    } else {
    }
    %c0 = arith.constant 0 : index
    %c0_1 = arith.constant 0 : index
    %3 = vector.load %arg2[%c0, %c0_1] : memref<16x128xf32, #tpu.memory_space<vmem>>, vector<16x128xf32>
    %4 = vector.shape_cast %3 : vector<16x128xf32> to vector<2x8x128xf32>
    %cst = arith.constant dense<0x7F800000> : vector<8x128xf32>
    %5 = vector.multi_reduction <minimumf>, %4, %cst [0] : vector<2x8x128xf32> to vector<8x128xf32>
    %6 = vector.shape_cast %3 : vector<16x128xf32> to vector<2x8x128xf32>
    %cst_2 = arith.constant dense<0xFF800000> : vector<8x128xf32>
    %7 = vector.multi_reduction <maximumf>, %6, %cst_2 [0] : vector<2x8x128xf32> to vector<8x128xf32>
    %c0_3 = arith.constant 0 : index
    %c0_4 = arith.constant 0 : index
    %8 = vector.load %arg3[%c0_3, %c0_4] : memref<8x128xf32, #tpu.memory_space<vmem>>, vector<8x128xf32>
    %9 = arith.minimumf %8, %5 : vector<8x128xf32>
    %c0_5 = arith.constant 0 : index
    %c0_6 = arith.constant 0 : index
    %10 = vector.load %arg3[%c0_5, %c0_6] : memref<8x128xf32, #tpu.memory_space<vmem>>, vector<8x128xf32>
    tpu.vector_store %arg3[%c0_5, %c0_6], %9 {strides = array<i32>} : memref<8x128xf32, #tpu.memory_space<vmem>>, vector<8x128xf32>,
    %c0_7 = arith.constant 0 : index
    %c0_8 = arith.constant 0 : index
    %11 = vector.load %arg4[%c0_7, %c0_8] : memref<8x128xf32, #tpu.memory_space<vmem>>, vector<8x128xf32>
    %12 = arith.maximumf %11, %7 : vector<8x128xf32>
    %c0_9 = arith.constant 0 : index
    %c0_10 = arith.constant 0 : index
    %13 = vector.load %arg4[%c0_9, %c0_10] : memref<8x128xf32, #tpu.memory_space<vmem>>, vector<8x128xf32>
    tpu.vector_store %arg4[%c0_9, %c0_10], %12 {strides = array<i32>} : memref<8x128xf32, #tpu.memory_space<vmem>>, vector<8x128xf32>,
    return
  }
  func.func @transform_0(%arg0: i32, %arg1: i32) -> (i32, i32) {
    %c1_i32 = arith.constant 1 : i32
    %0 = arith.muli %arg0, %c1_i32 : i32
    %1 = arith.addi %0, %arg1 : i32
    %c0_i32 = arith.constant 0 : i32
    %2 = arith.minsi %1, %c0_i32 : i32
    %c0_i32_0 = arith.constant 0 : i32
    %c0_i32_1 = arith.constant 0 : i32
    return %2, %c0_i32_0 : i32, i32
  }
  func.func @transform_1(%arg0: i32, %arg1: i32) -> (i32, i32) {
    %c0_i32 = arith.constant 0 : i32
    %c0_i32_0 = arith.constant 0 : i32
    return %arg0, %c0_i32 : i32, i32
  }
  func.func @transform_2(%arg0: i32, %arg1: i32) -> (i32, i32) {
    %c0_i32 = arith.constant 0 : i32
    %c0_i32_0 = arith.constant 0 : i32
    return %arg0, %c0_i32 : i32, i32
  }
}

</mosaic_0001>

<llo_original>
// kernel: _run_observer.1
$region0: #{_run_observer.1}
  #allocation0 [shape = 'u32[]', space=smem, size = 0x4, offset = 0x4, fixed_abs, tag = 'smem constant byte address 0x4 - core index']
  #allocation1 [shape = 'u32[144,128]{1,0:T(1,128)}', space=vmem, size = 0x12000, scoped, tag = 'internal scratch']
  %s0 = inlined_call_operand.vmem [shape: f32[16,128], index: 0, kind: input, shape index: {}]
  %s1 = inlined_call_operand.vmem [shape: f32[8,128], index: 1, kind: output, shape index: {0}]
  %s2 = inlined_call_operand.vmem [shape: f32[8,128], index: 2, kind: output, shape index: {1}]
  %3 = xla_tuple %s1, %s2
  %s4 = sld [smem:[#allocation0]]
  $region26: #{_run_observer.1} parent=0
    _
  %s6 = ssub.s32 1, %s4
  %s7 = scalar_select 0, %s6, %s4
  // Predicated region
  $region2: #{_run_observer.1} parent=0 // pred_check
    _
  $region3: #{_run_observer.1} parent=0 // pred_check_branch
    %9 = sbr.rel (0) target = $region5
  $region4: #{_run_observer.1} parent=0 // pred_region
    %s10 = sadd.s32 0, 0
    %p11 = scmp.lt.s32.totalorder %s10, 0
    %s12 = scalar_select %p11, %s10, 0
    %s13 = smul.u32 2, %s12
    %p14 = scmp.lt.s32.totalorder %s13, 1
    %s15 = scalar_select %p14, %s13, 1
    %s16 = smul.addr %s15, 8
    %s17 = scalar_lea.vmem %s0, %s16
    %s18 = sadd.s32 0, 0
    %p19 = scmp.lt.s32.totalorder %s18, 0
    %s20 = scalar_select %p19, %s18, 0
    %s21 = smul.u32 2, %s20
  $region5: #{_run_observer.1} parent=0 // pred_fallthru
    _
  %s22 = sadd.s32 0, 0
  %p23 = scmp.lt.s32.totalorder %s22, 0
  %s24 = scalar_select %p23, %s22, 0
  %s25 = smul.u32 2, %s24
  %p26 = scmp.lt.s32.totalorder %s25, 1
  %s27 = scalar_select %p26, %s25, 1
  %s28 = smul.addr %s27, 8
  %s29 = scalar_lea.vmem %s0, %s28
  %s30 = sadd.s32 0, 0
  %p31 = scmp.lt.s32.totalorder %s30, 0
  %s32 = scalar_select %p31, %s30, 0
  %s33 = smul.u32 2, %s32
  %p34 = scmp.lt.s32.totalorder %s33, 1
  %s35 = scalar_select %p34, %s33, 1
  %s36 = smul.addr %s35, 8
  %s37 = scalar_lea.vmem %s0, %s36
  %s38 = sadd.s32 0, 0
  %p39 = scmp.lt.s32.totalorder %s38, 0
  %s40 = scalar_select %p39, %s38, 0
  %s41 = smul.u32 2, %s40
  %p42 = scmp.eq.s32.totalorder 0, 0
  // Predicated region
  $region6: #{_run_observer.1} parent=0 // pred_check
    %p43 = pneg %p42
  $region7: #{_run_observer.1} parent=0 // pred_check_branch
    %45 = sbr.rel (%p43) target = $region9
  $region8: #{_run_observer.1} parent=0 // pred_region
    %46 = vst [vmem:[%s1] sm:$0xff] inf
    %47 = vst [vmem:[%s2] sm:$0xff] -inf
  $region9: #{_run_observer.1} parent=0 // pred_fallthru
    _
  %v48 = vld [vmem:[%s37] sm:$0xff]
  %v49 = vld [vmem:[%s37 + $0x8] sm:$0xff]
  %v50 = vmin.f32 %v48, %v49
  %v51 = vmax.f32 %v48, %v49
  %v52 = vld [vmem:[%s1] sm:$0xff]
  %v53 = vmin.f32 %v52, %v50
  %54 = vst [vmem:[%s1] sm:$0xff] %v53
  %v55 = vld [vmem:[%s2] sm:$0xff]
  %v56 = vmax.f32 %v55, %v51
  %57 = vst [vmem:[%s2] sm:$0xff] %v56
  // Predicated region
  $region10: #{_run_observer.1} parent=0 // pred_check
    _
  $region11: #{_run_observer.1} parent=0 // pred_check_branch
    %59 = sbr.rel (0) target = $region13
  $region12: #{_run_observer.1} parent=0 // pred_region
    _
  $region13: #{_run_observer.1} parent=0 // pred_fallthru
    _
  // Predicated region
  $region14: #{_run_observer.1} parent=0 // pred_check
    _
  $region15: #{_run_observer.1} parent=0 // pred_check_branch
    %61 = sbr.rel (0) target = $region17
  $region16: #{_run_observer.1} parent=0 // pred_region
    _
  $region17: #{_run_observer.1} parent=0 // pred_fallthru
    _
  // Predicated region
  $region18: #{_run_observer.1} parent=0 // pred_check
    _
  $region19: #{_run_observer.1} parent=0 // pred_check_branch
    %63 = sbr.rel (0) target = $region21
  $region20: #{_run_observer.1} parent=0 // pred_region
    _
  $region21: #{_run_observer.1} parent=0 // pred_fallthru
    _
  // Predicated region
  $region22: #{_run_observer.1} parent=0 // pred_check
    _
  $region23: #{_run_observer.1} parent=0 // pred_check_branch
    %65 = sbr.rel (0) target = $region25
  $region24: #{_run_observer.1} parent=0 // pred_region
    _
  $region25: #{_run_observer.1} parent=0 // pred_fallthru
    _

</llo_original>
